<compile_context>
chip_gen: v6e
topology: v6e:2x2x1
jax: 0.10.0
libtpu: 0.0.40
codegen_flags: <defaults>
</compile_context>

<pallas_src>
import functools

import jax
import jax.numpy as jnp
from jax.experimental import pallas as pl
from jax.experimental.pallas import tpu as pltpu


def _pick_row_tile(n_rows: int) -> int:
    """Largest 8-multiple row tile that divides n_rows (VMEM-friendly cap at 1024)."""
    for t in (1024, 512, 256, 128, 64, 32, 16, 8):
        if n_rows % t == 0:
            return t
    return n_rows  # tiny / ragged row count: single full-extent block


# ---------------------------------------------------------------------------
# Kernel 1: LayerNorm  (alpha * (x - mean) / (std + eps) + bias, unbiased std)
# ---------------------------------------------------------------------------
def _layernorm_kernel(ab_ref, x_ref, o_ref, *, eps: float):
    x = x_ref[...].astype(jnp.float32)                       # (tile, D)
    d = x.shape[-1]
    mean = jnp.mean(x, axis=-1, keepdims=True)
    xc = x - mean
    # torch.Tensor.std(dim=-1) defaults to the unbiased estimator (divide by D-1)
    var = jnp.sum(xc * xc, axis=-1, keepdims=True) / jnp.float32(max(d - 1, 1))
    std = jnp.sqrt(var)
    alpha = ab_ref[0]
    bias = ab_ref[1]
    o_ref[...] = (alpha * xc / (std + eps) + bias).astype(o_ref.dtype)


def layer_norm(x2d, alpha_bias, *, eps: float):
    n, d = x2d.shape
    tile = _pick_row_tile(n)
    row_spec = pl.BlockSpec((tile, d), lambda i: (i, 0))
    return pl.pallas_call(
        functools.partial(_layernorm_kernel, eps=float(eps)),
        out_shape=jax.ShapeDtypeStruct((n, d), x2d.dtype),
        grid=(n // tile,),
        in_specs=[
            pl.BlockSpec(memory_space=pltpu.MemorySpace.SMEM),  # [alpha, bias] scalars
            row_spec,
        ],
        out_specs=row_spec,
        compiler_params=pltpu.CompilerParams(dimension_semantics=("parallel",)),
    )(alpha_bias, x2d)


# ---------------------------------------------------------------------------
# Kernel 2: residual add (+ fused inverted dropout on the sublayer branch)
# ---------------------------------------------------------------------------
def _residual_add_kernel(x_ref, s_ref, o_ref):
    o_ref[...] = x_ref[...] + s_ref[...]


def _residual_dropout_add_kernel(x_ref, s_ref, u_ref, o_ref, *, p: float):
    keep = u_ref[...] >= jnp.float32(p)                       # drop with prob p
    scale = jnp.float32(1.0 / (1.0 - p))
    s = s_ref[...].astype(jnp.float32)
    y = x_ref[...].astype(jnp.float32) + jnp.where(keep, s * scale, 0.0)
    o_ref[...] = y.astype(o_ref.dtype)


def residual_dropout_add(x2d, s2d, *, dropout_p: float, training: bool, rng_key):
    n, d = x2d.shape
    tile = _pick_row_tile(n)
    grid = (n // tile,)
    row_spec = pl.BlockSpec((tile, d), lambda i: (i, 0))
    cparams = pltpu.CompilerParams(dimension_semantics=("parallel",))

    if (not training) or dropout_p <= 0.0:
        return pl.pallas_call(
            _residual_add_kernel,
            out_shape=jax.ShapeDtypeStruct((n, d), x2d.dtype),
            grid=grid,
            in_specs=[row_spec, row_spec],
            out_specs=row_spec,
            compiler_params=cparams,
        )(x2d, s2d)

    if dropout_p >= 1.0:
        # nn.Dropout(p=1) zeroes the sublayer branch entirely -> out = x
        return x2d

    # Randomness in the wrapper (portable); kernel fuses mask + scale + residual add.
    u = jax.random.uniform(rng_key, (n, d), dtype=jnp.float32)
    return pl.pallas_call(
        functools.partial(_residual_dropout_add_kernel, p=float(dropout_p)),
        out_shape=jax.ShapeDtypeStruct((n, d), x2d.dtype),
        grid=grid,
        in_specs=[row_spec, row_spec, row_spec],
        out_specs=row_spec,
        compiler_params=cparams,
    )(x2d, s2d, u)


# ---------------------------------------------------------------------------
# Wrapper (mirrors ResidualConnection.forward)
# ---------------------------------------------------------------------------
def residual_connection_forward(x, sublayer, *, alpha=1.0, bias=0.0, eps=1e-6,
                                dropout_p=0.0, training=False, rng_key=None):
    """x: (..., D); sublayer: JAX callable applied to the LayerNorm'd input."""
    orig_shape = x.shape
    d = orig_shape[-1]
    x2d = x.reshape(-1, d)

    ab = jnp.asarray([alpha, bias], dtype=jnp.float32)
    normed = layer_norm(x2d, ab, eps=eps)

    # TODO(synk): `sublayer` is an arbitrary user callable, so it runs as plain
    # JAX between the two Pallas kernels (cannot be fused in general).
    s = sublayer(normed.reshape(orig_shape)).reshape(-1, d).astype(x2d.dtype)

    out = residual_dropout_add(x2d, s, dropout_p=dropout_p,
                               training=training, rng_key=rng_key)
    return out.reshape(orig_shape)


# ---------------------------------------------------------------------------
if __name__ == "__main__":
    B, S, D = 2, 8, 32
    EPS = 1e-6
    ALPHA, BIAS = 1.0, 0.0
    DROPOUT_P = 0.1

    key = jax.random.PRNGKey(0)
    kx, kw, kdrop = jax.random.split(key, 3)
    x = jax.random.normal(kx, (B, S, D), dtype=jnp.float32)
    W = jax.random.normal(kw, (D, D), dtype=jnp.float32) / jnp.sqrt(D)

    sublayer = lambda z: jnp.tanh(z @ W)  # stand-in for attention / FFN sublayer

    # ---- pure-JAX reference (eval mode: dropout = identity) -------------
    def ref_layernorm(v):
        mean = v.mean(axis=-1, keepdims=True)
        std = v.std(axis=-1, keepdims=True, ddof=1)   # unbiased, like torch
        return ALPHA * (v - mean) / (std + EPS) + BIAS

    s_ref = sublayer(ref_layernorm(x))
    ref_eval = x + s_ref

    # ---- eval-mode path --------------------------------------------------
    out_eval = residual_connection_forward(
        x, sublayer, alpha=ALPHA, bias=BIAS, eps=EPS,
        dropout_p=DROPOUT_P, training=False)
    out_eval = jax.block_until_ready(out_eval)
    assert out_eval.shape == (B, S, D) and out_eval.dtype == x.dtype
    assert jnp.allclose(out_eval, ref_eval, atol=1e-5, rtol=1e-5)

    # ---- training-mode path (fused dropout in kernel 2) -------------------
    out_train = residual_connection_forward(
        x, sublayer, alpha=ALPHA, bias=BIAS, eps=EPS,
        dropout_p=DROPOUT_P, training=True, rng_key=kdrop)
    out_train = jax.block_until_ready(out_train)
    assert out_train.shape == (B, S, D)

    delta = out_train - x                        # 0 where dropped, s/(1-p) where kept
    kept = delta != 0.0
    assert jnp.allclose(jnp.where(kept, delta, 0.0),
                        jnp.where(kept, s_ref / (1.0 - DROPOUT_P), 0.0),
                        atol=1e-5, rtol=1e-5)
    drop_frac = 1.0 - jnp.mean(kept.astype(jnp.float32))
    assert 0.0 < float(drop_frac) < 0.5          # loose sanity check for p=0.1

    print("KERNEL_OK")
</pallas_src>

<mosaic_0001>
module attributes {stable_mosaic.version = 11 : i64} {
  func.func @_layernorm_kernel(%arg0: i32, %arg1: memref<2xf32, #tpu.memory_space<smem>>, %arg2: memref<16x32xf32, #tpu.memory_space<vmem>>, %arg3: memref<16x32xf32, #tpu.memory_space<vmem>>) attributes {dimension_semantics = [#tpu.dimension_semantics<parallel>], iteration_bounds = array<i64: 1>, scalar_prefetch = 0 : i64, scratch_operands = 0 : i64, tpu.core_type = #tpu.core_type<tc>, window_params = [{transform_indices = @transform_0, window_bounds = array<i64: 2>}, {transform_indices = @transform_1, window_bounds = array<i64: 16, 32>}, {transform_indices = @transform_2, window_bounds = array<i64: 16, 32>}]} {
    %c0 = arith.constant 0 : index
    %c0_0 = arith.constant 0 : index
    %0 = vector.load %arg2[%c0, %c0_0] : memref<16x32xf32, #tpu.memory_space<vmem>>, vector<16x32xf32>
    %cst = arith.constant dense<0.000000e+00> : vector<16xf32>
    %1 = vector.multi_reduction <add>, %0, %cst [1] : vector<16x32xf32> to vector<16xf32>
    %2 = vector.shape_cast %1 : vector<16xf32> to vector<16x1xf32>
    %cst_1 = arith.constant 3.200000e+01 : f32
    %3 = vector.broadcast %cst_1 : f32 to vector<16x1xf32>
    %4 = arith.divf %2, %3 : vector<16x1xf32>
    %5 = vector.broadcast %4 : vector<16x1xf32> to vector<16x32xf32>
    %6 = arith.subf %0, %5 : vector<16x32xf32>
    %7 = arith.mulf %6, %6 : vector<16x32xf32>
    %cst_2 = arith.constant dense<0.000000e+00> : vector<16xf32>
    %8 = vector.multi_reduction <add>, %7, %cst_2 [1] : vector<16x32xf32> to vector<16xf32>
    %9 = vector.shape_cast %8 : vector<16xf32> to vector<16x1xf32>
    %cst_3 = arith.constant 3.100000e+01 : f32
    %10 = vector.broadcast %cst_3 : f32 to vector<16x1xf32>
    %11 = arith.divf %9, %10 : vector<16x1xf32>
    %12 = math.sqrt %11 : vector<16x1xf32>
    %c0_4 = arith.constant 0 : index
    %13 = memref.load %arg1[%c0_4] : memref<2xf32, #tpu.memory_space<smem>>
    %c1 = arith.constant 1 : index
    %14 = memref.load %arg1[%c1] : memref<2xf32, #tpu.memory_space<smem>>
    %15 = vector.broadcast %13 : f32 to vector<16x32xf32>
    %16 = arith.mulf %15, %6 : vector<16x32xf32>
    %cst_5 = arith.constant 9.99999997E-7 : f32
    %17 = vector.broadcast %cst_5 : f32 to vector<16x1xf32>
    %18 = arith.addf %12, %17 : vector<16x1xf32>
    %19 = vector.broadcast %18 : vector<16x1xf32> to vector<16x32xf32>
    %20 = arith.divf %16, %19 : vector<16x32xf32>
    %21 = vector.broadcast %14 : f32 to vector<16x32xf32>
    %22 = arith.addf %20, %21 : vector<16x32xf32>
    %c0_6 = arith.constant 0 : index
    %c0_7 = arith.constant 0 : index
    %23 = vector.load %arg3[%c0_6, %c0_7] : memref<16x32xf32, #tpu.memory_space<vmem>>, vector<16x32xf32>
    tpu.vector_store %arg3[%c0_6, %c0_7], %22 {strides = array<i32>} : memref<16x32xf32, #tpu.memory_space<vmem>>, vector<16x32xf32>,
    return
  }
  func.func @transform_0(%arg0: i32) -> i32 {
    %c0_i32 = arith.constant 0 : i32
    %c0_i32_0 = arith.constant 0 : i32
    return %c0_i32 : i32
  }
  func.func @transform_1(%arg0: i32) -> (i32, i32) {
    %c0_i32 = arith.constant 0 : i32
    %c0_i32_0 = arith.constant 0 : i32
    return %arg0, %c0_i32 : i32, i32
  }
  func.func @transform_2(%arg0: i32) -> (i32, i32) {
    %c0_i32 = arith.constant 0 : i32
    %c0_i32_0 = arith.constant 0 : i32
    return %arg0, %c0_i32 : i32, i32
  }
}

</mosaic_0001>

<llo_original>
// kernel: tpu_custom_call.1
$region0: #{tpu_custom_call.1}
  #allocation0 [shape = 'u32[]', space=smem, size = 0x4, offset = 0x4, fixed_abs, tag = 'smem constant byte address 0x4 - core index']
  #allocation1 [shape = 'u32[144,128]{1,0:T(1,128)}', space=vmem, size = 0x12000, scoped, tag = 'internal scratch']
  %s0 = inlined_call_operand.hbm [shape: f32[2], index: 0, kind: input, shape index: {}]
  %s1 = inlined_call_operand.hbm [shape: f32[16,32], index: 1, kind: input, shape index: {}]
  %s2 = inlined_call_operand.hbm [shape: f32[16,32], index: 2, kind: output, shape index: {}]
  %s3 = sld [smem:[#allocation0]]
  $region26: #{tpu_custom_call.1} parent=0
    _
  %s5 = ssub.s32 1, %s3
  %s6 = scalar_select 0, %s5, %s3
  $region1: #{tpu_custom_call.1} parent=0
    #allocation2 [shape = 'u8[512]{0}', space=smem, size = 0x200, scoped, tag = 'input window, operand 0, single buffered']
    #allocation3 [shape = 's32[1]{0}', space=sflag, size = 0x4, scoped, tag = 'scoped memory for tpu_custom_call.1']
    #allocation4 [shape = 's32[1]{0}', space=sflag, size = 0x4, scoped, tag = 'scoped memory for tpu_custom_call.1']
    #allocation5 [shape = 's32[1]{0}', space=sflag, size = 0x4, scoped, tag = 'scoped memory for tpu_custom_call.1']
    #allocation6 [shape = 'u8[8192]{0}', space=vmem, size = 0x2000, scoped, tag = 'input window, operand 1, single buffered']
    #allocation7 [shape = 'u8[8192]{0}', space=vmem, size = 0x2000, scoped, tag = 'output window, operand 0, single buffered']
    %7 = vsyncpa [#allocation5], 0
    %8 = vsyncpa [#allocation3], 0
    %9 = vsyncpa [#allocation4], 0
    // Predicated region
    $region2: #{tpu_custom_call.1} parent=1 // pred_check
      _
    $region3: #{tpu_custom_call.1} parent=1 // pred_check_branch
      %11 = sbr.rel (0) target = $region5
    $region4: #{tpu_custom_call.1} parent=1 // pred_region
      %s13 = ssub.s32 16, 16
      %14 = vsyncadd [#allocation5], %s13
      %17 = dma.hbm_to_smem %s0, 16, [#allocation2], [#allocation5]
    $region5: #{tpu_custom_call.1} parent=1 // pred_fallthru
      _
    // Predicated region
    $region6: #{tpu_custom_call.1} parent=1 // pred_check
      _
    $region7: #{tpu_custom_call.1} parent=1 // pred_check_branch
      %19 = sbr.rel (0) target = $region9
    $region8: #{tpu_custom_call.1} parent=1 // pred_region
      %s21 = ssub.s32 256, 256
      %22 = vsyncadd [#allocation3], %s21
      %s23 = sshll.u32 [#allocation6], 4
      %s24 = int_to_ptr.vmem [resolvable:$true] %s23
      %29 = dma.hbm_to_vmem [thread:$0]  %s1, 256, %s24, [#allocation3], 128, 128, 8
    $region9: #{tpu_custom_call.1} parent=1 // pred_fallthru
      _
    // Predicated region
    $region10: #{tpu_custom_call.1} parent=1 // pred_check
      _
    $region11: #{tpu_custom_call.1} parent=1 // pred_check_branch
      %31 = sbr.rel (0) target = $region13
    $region12: #{tpu_custom_call.1} parent=1 // pred_region
      %32 = dma.done [#allocation5], 16
    $region13: #{tpu_custom_call.1} parent=1 // pred_fallthru
      _
    // Predicated region
    $region14: #{tpu_custom_call.1} parent=1 // pred_check
      _
    $region15: #{tpu_custom_call.1} parent=1 // pred_check_branch
      %34 = sbr.rel (0) target = $region17
    $region16: #{tpu_custom_call.1} parent=1 // pred_region
      %35 = dma.done [#allocation3], 256
    $region17: #{tpu_custom_call.1} parent=1 // pred_fallthru
      _
    %36 = sfence
    %v37 = vld [vmem:[#allocation6] sm:$0xff]
    %v38 = vld [vmem:[#allocation6 + $0x8] sm:$0xff]
    %vm39 = vcmask 261120
    %v40 = vsel %vm39, %v37, 0.0
    %41 = vadd.xlane.f32.xlu0 %v40
    %v42 = vpop.xlane.xlu0 %41
    %v43 = vsel %vm39, %v38, 0.0
    %44 = vadd.xlane.f32.xlu0 %v43
    %v45 = vpop.xlane.xlu0 %44
    %v46 = vrcp.pop 32.0
    %v47 = vmul.f32 %v42, %v46
    %v48 = vmul.f32 %v45, %v46
    %v49 = vsub.f32 %v37, %v47
    %v50 = vsub.f32 %v38, %v48
    %v51 = vmul.f32 %v49, %v49
    %v52 = vmul.f32 %v50, %v50
    %v53 = vsel %vm39, %v51, 0.0
    %54 = vadd.xlane.f32.xlu0 %v53
    %v55 = vpop.xlane.xlu0 %54
    %v56 = vsel %vm39, %v52, 0.0
    %57 = vadd.xlane.f32.xlu0 %v56
    %v58 = vpop.xlane.xlu0 %57
    %v59 = vrcp.pop 31.0
    %v60 = vmul.f32 %v55, %v59
    %v61 = vmul.f32 %v58, %v59
    %v62 = vrsqrt.pop %v60
    %v63 = vmul.f32 %v60, %v62
    %vm64 = vcmp.eq.f32.partialorder %v60, inf
    %v65 = vsel %vm64, %v60, %v63
    %vm66 = vcmp.eq.f32.partialorder %v60, 0.0
    %v67 = vand.u32 %v60, 2147483648
    %v68 = vsel %vm66, %v67, %v65
    %v69 = vrsqrt.pop %v61
    %v70 = vmul.f32 %v61, %v69
    %vm71 = vcmp.eq.f32.partialorder %v61, inf
    %v72 = vsel %vm71, %v61, %v70
    %vm73 = vcmp.eq.f32.partialorder %v61, 0.0
    %v74 = vand.u32 %v61, 2147483648
    %v75 = vsel %vm73, %v74, %v72
    %s76 = sld [smem:[#allocation2]]
    %s77 = sld [smem:[#allocation2 + $0x1]]
    %v78 = vstv %s76
    %v79 = vmul.f32 %v78, %v49
    %v80 = vmul.f32 %v78, %v50
    %v81 = vadd.f32 %v68, 1e-06
    %v82 = vadd.f32 %v75, 1e-06
    %v83 = vrcp.pop %v81
    %v84 = vmul.f32 %v79, %v83
    %v85 = vrcp.pop %v82
    %v86 = vmul.f32 %v80, %v85
    %v87 = vstv %s77
    %v88 = vadd.f32 %v84, %v87
    %v89 = vadd.f32 %v86, %v87
    %90 = vst.msk [vmem:[#allocation7] sm:$0xff] %vm39, %v88
    %91 = vst.msk [vmem:[#allocation7 + $0x8] sm:$0xff] %vm39, %v89
    // Predicated region
    $region18: #{tpu_custom_call.1} parent=1 // pred_check
      _
    $region19: #{tpu_custom_call.1} parent=1 // pred_check_branch
      %93 = sbr.rel (0) target = $region21
    $region20: #{tpu_custom_call.1} parent=1 // pred_region
      %s95 = ssub.s32 256, 256
      %96 = vsyncadd [#allocation4], %s95
      %s97 = sshll.u32 [#allocation7], 4
      %s98 = int_to_ptr.vmem [resolvable:$true] %s97
      %103 = dma.vmem_to_hbm [thread:$0]  %s98, 256, %s2, [#allocation4], 128, 128, 8
    $region21: #{tpu_custom_call.1} parent=1 // pred_fallthru
      _
    // Predicated region
    $region22: #{tpu_custom_call.1} parent=1 // pred_check
      _
    $region23: #{tpu_custom_call.1} parent=1 // pred_check_branch
      %105 = sbr.rel (0) target = $region25
    $region24: #{tpu_custom_call.1} parent=1 // pred_region
      %106 = dma.done [#allocation4], 256
    $region25: #{tpu_custom_call.1} parent=1 // pred_fallthru
      _
    %107 = vsyncpa [#allocation3], 1
    %108 = vsyncpa [#allocation4], 1
    %109 = vsyncpa [#allocation5], 1

</llo_original>
